<compile_context>
chip_gen: v7x
topology: tpu7x:2x2x1
jax: 0.10.0
libtpu: 0.0.40
codegen_flags: <defaults>
</compile_context>

<pallas_src>
import functools

import jax
import jax.numpy as jnp
from jax.experimental import pallas as pl
from jax.experimental.pallas import tpu as pltpu


def _ntxent_kernel(qi_ref, qj_ref, ki_ref, kj_ref, loss_ref,
                   m_top, l_top, m_bot, l_bot, *,
                   inv_temp: float, n_total: int):
    """One (row_block, col_block) grid step.

    qi_ref/qj_ref : (TM, Dp) row tiles of z_i / z_j  (the 2*TM query rows)
    ki_ref/kj_ref : (TN, Dp) col tiles of z_i / z_j  (the 2*TN key columns)
    loss_ref      : SMEM (1, 1) scalar accumulator (the final mean loss)
    m_*, l_*      : VMEM (TM, 1) online-LSE running max / sum, per half
    """
    i = pl.program_id(0)
    j = pl.program_id(1)
    n_j = pl.num_programs(1)

    # Zero the global accumulator exactly once.
    @pl.when(jnp.logical_and(i == 0, j == 0))
    def _():
        loss_ref[0, 0] = jnp.float32(0.0)

    # Reset the online-softmax state at the start of every row block.
    @pl.when(j == 0)
    def _():
        m_top[...] = jnp.full_like(m_top, -jnp.inf)
        l_top[...] = jnp.zeros_like(l_top)
        m_bot[...] = jnp.full_like(m_bot, -jnp.inf)
        l_bot[...] = jnp.zeros_like(l_bot)

    # Fold 1/T into the small LHS tiles (keeps operand dtype; f32 accumulation).
    qi = qi_ref[...] * inv_temp
    qj = qj_ref[...] * inv_temp
    ki = ki_ref[...]
    kj = kj_ref[...]

    dn = (((1,), (1,)), ((), ()))  # contract last dim of both -> no transpose
    s_ii = jax.lax.dot_general(qi, ki, dn, preferred_element_type=jnp.float32)
    s_ij = jax.lax.dot_general(qi, kj, dn, preferred_element_type=jnp.float32)
    s_ji = jax.lax.dot_general(qj, ki, dn, preferred_element_type=jnp.float32)
    s_jj = jax.lax.dot_general(qj, kj, dn, preferred_element_type=jnp.float32)

    # Online LSE update for the "top" rows (rows coming from z_i).
    blk_max = jnp.maximum(jnp.max(s_ii, axis=-1, keepdims=True),
                          jnp.max(s_ij, axis=-1, keepdims=True))
    m_new = jnp.maximum(m_top[...], blk_max)
    alpha = jnp.exp(m_top[...] - m_new)
    l_top[...] = (alpha * l_top[...]
                  + jnp.sum(jnp.exp(s_ii - m_new), axis=-1, keepdims=True)
                  + jnp.sum(jnp.exp(s_ij - m_new), axis=-1, keepdims=True))
    m_top[...] = m_new

    # Online LSE update for the "bottom" rows (rows coming from z_j).
    blk_max_b = jnp.maximum(jnp.max(s_ji, axis=-1, keepdims=True),
                            jnp.max(s_jj, axis=-1, keepdims=True))
    m_new_b = jnp.maximum(m_bot[...], blk_max_b)
    alpha_b = jnp.exp(m_bot[...] - m_new_b)
    l_bot[...] = (alpha_b * l_bot[...]
                  + jnp.sum(jnp.exp(s_ji - m_new_b), axis=-1, keepdims=True)
                  + jnp.sum(jnp.exp(s_jj - m_new_b), axis=-1, keepdims=True))
    m_bot[...] = m_new_b

    # Finalize this row block once its full row (all 2B columns) has been seen.
    @pl.when(j == n_j - 1)
    def _():
        # Target logit is analytic: z_i[r] . z_j[r] / T (same for both halves).
        qif = qi_ref[...].astype(jnp.float32)
        qjf = qj_ref[...].astype(jnp.float32)
        target = jnp.sum(qif * qjf, axis=-1, keepdims=True) * jnp.float32(inv_temp)

        lse_top = m_top[...] + jnp.log(l_top[...])
        lse_bot = m_bot[...] + jnp.log(l_bot[...])
        block_sum = jnp.sum(lse_top - target) + jnp.sum(lse_bot - target)
        loss_ref[0, 0] += block_sum / jnp.float32(n_total)


def _choose_tile(b: int, target: int) -> int:
    """Largest tile <= target that is a multiple of 8 and divides b (else b)."""
    if b <= target:
        return b
    for t in range(target, 7, -8):
        if b % t == 0 and t % 8 == 0:
            return t
    return b  # fallback: no tiling on this axis (block == full array dim)


def ntxent_loss(z_i: jax.Array, z_j: jax.Array, temperature: float = 0.5,
                *, block_rows: int = 256, block_cols: int = 256) -> jax.Array:
    """Pallas NT-Xent loss. z_i, z_j: (B, D) features from two augmented views."""
    assert z_i.shape == z_j.shape and z_i.ndim == 2
    B, D = z_i.shape

    # Pad the feature dim to a lane-aligned multiple of 128 with zeros
    # (zero columns do not change any dot product).
    Dp = ((D + 127) // 128) * 128
    if Dp != D:
        pad = ((0, 0), (0, Dp - D))
        z_i = jnp.pad(z_i, pad)
        z_j = jnp.pad(z_j, pad)

    tm = _choose_tile(B, block_rows)
    tn = _choose_tile(B, block_cols)
    n_i = B // tm
    n_j = B // tn

    kernel = functools.partial(
        _ntxent_kernel,
        inv_temp=1.0 / float(temperature),
        n_total=2 * B,
    )

    grid_spec = pltpu.PrefetchScalarGridSpec(
        num_scalar_prefetch=0,
        grid=(n_i, n_j),
        in_specs=[
            pl.BlockSpec((tm, Dp), lambda i, j: (i, 0)),  # z_i row (query) tile
            pl.BlockSpec((tm, Dp), lambda i, j: (i, 0)),  # z_j row (query) tile
            pl.BlockSpec((tn, Dp), lambda i, j: (j, 0)),  # z_i col (key) tile
            pl.BlockSpec((tn, Dp), lambda i, j: (j, 0)),  # z_j col (key) tile
        ],
        out_specs=pl.BlockSpec((1, 1), lambda i, j: (0, 0),
                               memory_space=pltpu.SMEM),
        scratch_shapes=[
            pltpu.VMEM((tm, 1), jnp.float32),  # m_top
            pltpu.VMEM((tm, 1), jnp.float32),  # l_top
            pltpu.VMEM((tm, 1), jnp.float32),  # m_bot
            pltpu.VMEM((tm, 1), jnp.float32),  # l_bot
        ],
    )

    loss = pl.pallas_call(
        kernel,
        out_shape=jax.ShapeDtypeStruct((1, 1), jnp.float32),
        grid_spec=grid_spec,
        # Scalar loss is accumulated across BOTH grid axes in one SMEM cell,
        # so both axes stay "arbitrary" (column axis is the LSE reduction).
        compiler_params=pltpu.CompilerParams(
            dimension_semantics=("arbitrary", "arbitrary")),
    )(z_i, z_j, z_i, z_j)
    return loss[0, 0]


def _ntxent_loss_ref(z_i, z_j, temperature=0.5):
    """Pure-JAX reference mirroring the PyTorch module exactly."""
    B = z_i.shape[0]
    z = jnp.concatenate([z_i, z_j], axis=0).astype(jnp.float32)
    sim = (z @ z.T) / temperature
    labels = jnp.concatenate([jnp.arange(B) + B, jnp.arange(B)])
    logp = jax.nn.log_softmax(sim, axis=-1)
    return -jnp.mean(logp[jnp.arange(2 * B), labels])


if __name__ == "__main__":
    key = jax.random.PRNGKey(0)

    # Case 1: small demo shape (single-tile path), temperature=0.5 as in __init__.
    B, D = 8, 32
    k_i, k_j = jax.random.split(key)
    z_i = jax.random.normal(k_i, (B, D), dtype=jnp.float32)
    z_j = jax.random.normal(k_j, (B, D), dtype=jnp.float32)
    loss = jax.block_until_ready(jax.jit(ntxent_loss)(z_i, z_j))
    ref = _ntxent_loss_ref(z_i, z_j)
    assert jnp.allclose(loss, ref, rtol=1e-5, atol=1e-5), (loss, ref)

    # Case 2: exercise the tiled / online-LSE path (grid = (2, 2)).
    B2, D2 = 16, 96
    k_i2, k_j2 = jax.random.split(jax.random.PRNGKey(1))
    z_i2 = jax.random.normal(k_i2, (B2, D2), dtype=jnp.float32)
    z_j2 = jax.random.normal(k_j2, (B2, D2), dtype=jnp.float32)
    loss2 = jax.block_until_ready(
        jax.jit(functools.partial(ntxent_loss, block_rows=8, block_cols=8))(
            z_i2, z_j2))
    ref2 = _ntxent_loss_ref(z_i2, z_j2)
    assert jnp.allclose(loss2, ref2, rtol=1e-5, atol=1e-5), (loss2, ref2)

    print("KERNEL_OK")
</pallas_src>

<mosaic_0001>
module attributes {stable_mosaic.version = 11 : i64} {
  func.func @_ntxent_kernel(%arg0: i32, %arg1: i32, %arg2: memref<8x128xf32, #tpu.memory_space<vmem>>, %arg3: memref<8x128xf32, #tpu.memory_space<vmem>>, %arg4: memref<8x128xf32, #tpu.memory_space<vmem>>, %arg5: memref<8x128xf32, #tpu.memory_space<vmem>>, %arg6: memref<1x1xf32, #tpu.memory_space<smem>>, %arg7: memref<8x1xf32, #tpu.memory_space<vmem>>, %arg8: memref<8x1xf32, #tpu.memory_space<vmem>>, %arg9: memref<8x1xf32, #tpu.memory_space<vmem>>, %arg10: memref<8x1xf32, #tpu.memory_space<vmem>>) attributes {dimension_semantics = [#tpu.dimension_semantics<arbitrary>, #tpu.dimension_semantics<arbitrary>], iteration_bounds = array<i64: 1, 1>, scalar_prefetch = 0 : i64, scratch_operands = 4 : i64, tpu.core_type = #tpu.core_type<tc>, window_params = [{transform_indices = @transform_0, window_bounds = array<i64: 8, 128>}, {transform_indices = @transform_1, window_bounds = array<i64: 8, 128>}, {transform_indices = @transform_2, window_bounds = array<i64: 8, 128>}, {transform_indices = @transform_3, window_bounds = array<i64: 8, 128>}, {transform_indices = @transform_4, window_bounds = array<i64: 1, 1>}]} {
    %c0_i32 = arith.constant 0 : i32
    %0 = arith.cmpi eq, %arg0, %c0_i32 : i32
    %c0_i32_0 = arith.constant 0 : i32
    %1 = arith.cmpi eq, %arg1, %c0_i32_0 : i32
    %2 = arith.andi %0, %1 : i1
    %3 = arith.extui %2 : i1 to i32
    %c0_i32_1 = arith.constant 0 : i32
    %4 = arith.cmpi ne, %3, %c0_i32_1 : i32
    scf.if %4 {
      %cst_46 = arith.constant 0.000000e+00 : f32
      %c0_47 = arith.constant 0 : index
      %c0_48 = arith.constant 0 : index
      %75 = memref.load %arg6[%c0_47, %c0_48] : memref<1x1xf32, #tpu.memory_space<smem>>
      memref.store %cst_46, %arg6[%c0_47, %c0_48] : memref<1x1xf32, #tpu.memory_space<smem>>
    } else {
    }
    %c0_i32_2 = arith.constant 0 : i32
    %5 = arith.cmpi eq, %arg1, %c0_i32_2 : i32
    %6 = arith.extui %5 : i1 to i32
    %c0_i32_3 = arith.constant 0 : i32
    %7 = arith.cmpi ne, %6, %c0_i32_3 : i32
    scf.if %7 {
      %cst_46 = arith.constant 0xFF800000 : f32
      %75 = vector.broadcast %cst_46 : f32 to vector<8x1xf32>
      %c0_47 = arith.constant 0 : index
      %c0_48 = arith.constant 0 : index
      %76 = vector.load %arg7[%c0_47, %c0_48] : memref<8x1xf32, #tpu.memory_space<vmem>>, vector<8x1xf32>
      tpu.vector_store %arg7[%c0_47, %c0_48], %75 {strides = array<i32>} : memref<8x1xf32, #tpu.memory_space<vmem>>, vector<8x1xf32>,
      %cst_49 = arith.constant 0.000000e+00 : f32
      %77 = vector.broadcast %cst_49 : f32 to vector<8x1xf32>
      %c0_50 = arith.constant 0 : index
      %c0_51 = arith.constant 0 : index
      %78 = vector.load %arg8[%c0_50, %c0_51] : memref<8x1xf32, #tpu.memory_space<vmem>>, vector<8x1xf32>
      tpu.vector_store %arg8[%c0_50, %c0_51], %77 {strides = array<i32>} : memref<8x1xf32, #tpu.memory_space<vmem>>, vector<8x1xf32>,
      %cst_52 = arith.constant 0xFF800000 : f32
      %79 = vector.broadcast %cst_52 : f32 to vector<8x1xf32>
      %c0_53 = arith.constant 0 : index
      %c0_54 = arith.constant 0 : index
      %80 = vector.load %arg9[%c0_53, %c0_54] : memref<8x1xf32, #tpu.memory_space<vmem>>, vector<8x1xf32>
      tpu.vector_store %arg9[%c0_53, %c0_54], %79 {strides = array<i32>} : memref<8x1xf32, #tpu.memory_space<vmem>>, vector<8x1xf32>,
      %cst_55 = arith.constant 0.000000e+00 : f32
      %81 = vector.broadcast %cst_55 : f32 to vector<8x1xf32>
      %c0_56 = arith.constant 0 : index
      %c0_57 = arith.constant 0 : index
      %82 = vector.load %arg10[%c0_56, %c0_57] : memref<8x1xf32, #tpu.memory_space<vmem>>, vector<8x1xf32>
      tpu.vector_store %arg10[%c0_56, %c0_57], %81 {strides = array<i32>} : memref<8x1xf32, #tpu.memory_space<vmem>>, vector<8x1xf32>,
    } else {
    }
    %c0 = arith.constant 0 : index
    %c0_4 = arith.constant 0 : index
    %8 = vector.load %arg2[%c0, %c0_4] : memref<8x128xf32, #tpu.memory_space<vmem>>, vector<8x128xf32>
    %cst = arith.constant 2.000000e+00 : f32
    %9 = vector.broadcast %cst : f32 to vector<8x128xf32>
    %10 = arith.mulf %8, %9 : vector<8x128xf32>
    %c0_5 = arith.constant 0 : index
    %c0_6 = arith.constant 0 : index
    %11 = vector.load %arg3[%c0_5, %c0_6] : memref<8x128xf32, #tpu.memory_space<vmem>>, vector<8x128xf32>
    %cst_7 = arith.constant 2.000000e+00 : f32
    %12 = vector.broadcast %cst_7 : f32 to vector<8x128xf32>
    %13 = arith.mulf %11, %12 : vector<8x128xf32>
    %c0_8 = arith.constant 0 : index
    %c0_9 = arith.constant 0 : index
    %14 = vector.load %arg4[%c0_8, %c0_9] : memref<8x128xf32, #tpu.memory_space<vmem>>, vector<8x128xf32>
    %c0_10 = arith.constant 0 : index
    %c0_11 = arith.constant 0 : index
    %15 = vector.load %arg5[%c0_10, %c0_11] : memref<8x128xf32, #tpu.memory_space<vmem>>, vector<8x128xf32>
    %cst_12 = arith.constant dense<0.000000e+00> : vector<8x8xf32>
    %16 = tpu.matmul %10, %14, %cst_12 {dimension_numbers = #tpu.dot_dimension_numbers<[1], [1], [0], [0], [0, 0, 1, 0], [], []>} : vector<8x128xf32>, vector<8x128xf32>, vector<8x8xf32> -> vector<8x8xf32>
    %cst_13 = arith.constant dense<0.000000e+00> : vector<8x8xf32>
    %17 = tpu.matmul %10, %15, %cst_13 {dimension_numbers = #tpu.dot_dimension_numbers<[1], [1], [0], [0], [0, 0, 1, 0], [], []>} : vector<8x128xf32>, vector<8x128xf32>, vector<8x8xf32> -> vector<8x8xf32>
    %cst_14 = arith.constant dense<0.000000e+00> : vector<8x8xf32>
    %18 = tpu.matmul %13, %14, %cst_14 {dimension_numbers = #tpu.dot_dimension_numbers<[1], [1], [0], [0], [0, 0, 1, 0], [], []>} : vector<8x128xf32>, vector<8x128xf32>, vector<8x8xf32> -> vector<8x8xf32>
    %cst_15 = arith.constant dense<0.000000e+00> : vector<8x8xf32>
    %19 = tpu.matmul %13, %15, %cst_15 {dimension_numbers = #tpu.dot_dimension_numbers<[1], [1], [0], [0], [0, 0, 1, 0], [], []>} : vector<8x128xf32>, vector<8x128xf32>, vector<8x8xf32> -> vector<8x8xf32>
    %cst_16 = arith.constant dense<0xFF800000> : vector<8xf32>
    %20 = vector.multi_reduction <maximumf>, %16, %cst_16 [1] : vector<8x8xf32> to vector<8xf32>
    %21 = vector.shape_cast %20 : vector<8xf32> to vector<8x1xf32>
    %cst_17 = arith.constant dense<0xFF800000> : vector<8xf32>
    %22 = vector.multi_reduction <maximumf>, %17, %cst_17 [1] : vector<8x8xf32> to vector<8xf32>
    %23 = vector.shape_cast %22 : vector<8xf32> to vector<8x1xf32>
    %24 = arith.maximumf %21, %23 : vector<8x1xf32>
    %c0_18 = arith.constant 0 : index
    %c0_19 = arith.constant 0 : index
    %25 = vector.load %arg7[%c0_18, %c0_19] : memref<8x1xf32, #tpu.memory_space<vmem>>, vector<8x1xf32>
    %26 = arith.maximumf %25, %24 : vector<8x1xf32>
    %c0_20 = arith.constant 0 : index
    %c0_21 = arith.constant 0 : index
    %27 = vector.load %arg7[%c0_20, %c0_21] : memref<8x1xf32, #tpu.memory_space<vmem>>, vector<8x1xf32>
    %28 = arith.subf %27, %26 : vector<8x1xf32>
    %29 = math.exp %28 : vector<8x1xf32>
    %c0_22 = arith.constant 0 : index
    %c0_23 = arith.constant 0 : index
    %30 = vector.load %arg8[%c0_22, %c0_23] : memref<8x1xf32, #tpu.memory_space<vmem>>, vector<8x1xf32>
    %31 = arith.mulf %29, %30 : vector<8x1xf32>
    %32 = vector.broadcast %26 : vector<8x1xf32> to vector<8x8xf32>
    %33 = arith.subf %16, %32 : vector<8x8xf32>
    %34 = math.exp %33 : vector<8x8xf32>
    %cst_24 = arith.constant dense<0.000000e+00> : vector<8xf32>
    %35 = vector.multi_reduction <add>, %34, %cst_24 [1] : vector<8x8xf32> to vector<8xf32>
    %36 = vector.shape_cast %35 : vector<8xf32> to vector<8x1xf32>
    %37 = arith.addf %31, %36 : vector<8x1xf32>
    %38 = vector.broadcast %26 : vector<8x1xf32> to vector<8x8xf32>
    %39 = arith.subf %17, %38 : vector<8x8xf32>
    %40 = math.exp %39 : vector<8x8xf32>
    %cst_25 = arith.constant dense<0.000000e+00> : vector<8xf32>
    %41 = vector.multi_reduction <add>, %40, %cst_25 [1] : vector<8x8xf32> to vector<8xf32>
    %42 = vector.shape_cast %41 : vector<8xf32> to vector<8x1xf32>
    %43 = arith.addf %37, %42 : vector<8x1xf32>
    %c0_26 = arith.constant 0 : index
    %c0_27 = arith.constant 0 : index
    %44 = vector.load %arg8[%c0_26, %c0_27] : memref<8x1xf32, #tpu.memory_space<vmem>>, vector<8x1xf32>
    tpu.vector_store %arg8[%c0_26, %c0_27], %43 {strides = array<i32>} : memref<8x1xf32, #tpu.memory_space<vmem>>, vector<8x1xf32>,
    %c0_28 = arith.constant 0 : index
    %c0_29 = arith.constant 0 : index
    %45 = vector.load %arg7[%c0_28, %c0_29] : memref<8x1xf32, #tpu.memory_space<vmem>>, vector<8x1xf32>
    tpu.vector_store %arg7[%c0_28, %c0_29], %26 {strides = array<i32>} : memref<8x1xf32, #tpu.memory_space<vmem>>, vector<8x1xf32>,
    %cst_30 = arith.constant dense<0xFF800000> : vector<8xf32>
    %46 = vector.multi_reduction <maximumf>, %18, %cst_30 [1] : vector<8x8xf32> to vector<8xf32>
    %47 = vector.shape_cast %46 : vector<8xf32> to vector<8x1xf32>
    %cst_31 = arith.constant dense<0xFF800000> : vector<8xf32>
    %48 = vector.multi_reduction <maximumf>, %19, %cst_31 [1] : vector<8x8xf32> to vector<8xf32>
    %49 = vector.shape_cast %48 : vector<8xf32> to vector<8x1xf32>
    %50 = arith.maximumf %47, %49 : vector<8x1xf32>
    %c0_32 = arith.constant 0 : index
    %c0_33 = arith.constant 0 : index
    %51 = vector.load %arg9[%c0_32, %c0_33] : memref<8x1xf32, #tpu.memory_space<vmem>>, vector<8x1xf32>
    %52 = arith.maximumf %51, %50 : vector<8x1xf32>
    %c0_34 = arith.constant 0 : index
    %c0_35 = arith.constant 0 : index
    %53 = vector.load %arg9[%c0_34, %c0_35] : memref<8x1xf32, #tpu.memory_space<vmem>>, vector<8x1xf32>
    %54 = arith.subf %53, %52 : vector<8x1xf32>
    %55 = math.exp %54 : vector<8x1xf32>
    %c0_36 = arith.constant 0 : index
    %c0_37 = arith.constant 0 : index
    %56 = vector.load %arg10[%c0_36, %c0_37] : memref<8x1xf32, #tpu.memory_space<vmem>>, vector<8x1xf32>
    %57 = arith.mulf %55, %56 : vector<8x1xf32>
    %58 = vector.broadcast %52 : vector<8x1xf32> to vector<8x8xf32>
    %59 = arith.subf %18, %58 : vector<8x8xf32>
    %60 = math.exp %59 : vector<8x8xf32>
    %cst_38 = arith.constant dense<0.000000e+00> : vector<8xf32>
    %61 = vector.multi_reduction <add>, %60, %cst_38 [1] : vector<8x8xf32> to vector<8xf32>
    %62 = vector.shape_cast %61 : vector<8xf32> to vector<8x1xf32>
    %63 = arith.addf %57, %62 : vector<8x1xf32>
    %64 = vector.broadcast %52 : vector<8x1xf32> to vector<8x8xf32>
    %65 = arith.subf %19, %64 : vector<8x8xf32>
    %66 = math.exp %65 : vector<8x8xf32>
    %cst_39 = arith.constant dense<0.000000e+00> : vector<8xf32>
    %67 = vector.multi_reduction <add>, %66, %cst_39 [1] : vector<8x8xf32> to vector<8xf32>
    %68 = vector.shape_cast %67 : vector<8xf32> to vector<8x1xf32>
    %69 = arith.addf %63, %68 : vector<8x1xf32>
    %c0_40 = arith.constant 0 : index
    %c0_41 = arith.constant 0 : index
    %70 = vector.load %arg10[%c0_40, %c0_41] : memref<8x1xf32, #tpu.memory_space<vmem>>, vector<8x1xf32>
    tpu.vector_store %arg10[%c0_40, %c0_41], %69 {strides = array<i32>} : memref<8x1xf32, #tpu.memory_space<vmem>>, vector<8x1xf32>,
    %c0_42 = arith.constant 0 : index
    %c0_43 = arith.constant 0 : index
    %71 = vector.load %arg9[%c0_42, %c0_43] : memref<8x1xf32, #tpu.memory_space<vmem>>, vector<8x1xf32>
    tpu.vector_store %arg9[%c0_42, %c0_43], %52 {strides = array<i32>} : memref<8x1xf32, #tpu.memory_space<vmem>>, vector<8x1xf32>,
    %c0_i32_44 = arith.constant 0 : i32
    %72 = arith.cmpi eq, %arg1, %c0_i32_44 : i32
    %73 = arith.extui %72 : i1 to i32
    %c0_i32_45 = arith.constant 0 : i32
    %74 = arith.cmpi ne, %73, %c0_i32_45 : i32
    scf.if %74 {
      %c0_46 = arith.constant 0 : index
      %c0_47 = arith.constant 0 : index
      %75 = vector.load %arg2[%c0_46, %c0_47] : memref<8x128xf32, #tpu.memory_space<vmem>>, vector<8x128xf32>
      %c0_48 = arith.constant 0 : index
      %c0_49 = arith.constant 0 : index
      %76 = vector.load %arg3[%c0_48, %c0_49] : memref<8x128xf32, #tpu.memory_space<vmem>>, vector<8x128xf32>
      %77 = arith.mulf %75, %76 : vector<8x128xf32>
      %cst_50 = arith.constant dense<0.000000e+00> : vector<8xf32>
      %78 = vector.multi_reduction <add>, %77, %cst_50 [1] : vector<8x128xf32> to vector<8xf32>
      %79 = vector.shape_cast %78 : vector<8xf32> to vector<8x1xf32>
      %cst_51 = arith.constant 2.000000e+00 : f32
      %80 = vector.broadcast %cst_51 : f32 to vector<8x1xf32>
      %81 = arith.mulf %79, %80 : vector<8x1xf32>
      %c0_52 = arith.constant 0 : index
      %c0_53 = arith.constant 0 : index
      %82 = vector.load %arg7[%c0_52, %c0_53] : memref<8x1xf32, #tpu.memory_space<vmem>>, vector<8x1xf32>
      %c0_54 = arith.constant 0 : index
      %c0_55 = arith.constant 0 : index
      %83 = vector.load %arg8[%c0_54, %c0_55] : memref<8x1xf32, #tpu.memory_space<vmem>>, vector<8x1xf32>
      %84 = math.log %83 : vector<8x1xf32>
      %85 = arith.addf %82, %84 : vector<8x1xf32>
      %c0_56 = arith.constant 0 : index
      %c0_57 = arith.constant 0 : index
      %86 = vector.load %arg9[%c0_56, %c0_57] : memref<8x1xf32, #tpu.memory_space<vmem>>, vector<8x1xf32>
      %c0_58 = arith.constant 0 : index
      %c0_59 = arith.constant 0 : index
      %87 = vector.load %arg10[%c0_58, %c0_59] : memref<8x1xf32, #tpu.memory_space<vmem>>, vector<8x1xf32>
      %88 = math.log %87 : vector<8x1xf32>
      %89 = arith.addf %86, %88 : vector<8x1xf32>
      %90 = arith.subf %85, %81 : vector<8x1xf32>
      %91 = vector.shape_cast %90 : vector<8x1xf32> to vector<1x8x1xf32>
      %cst_60 = arith.constant dense<0.000000e+00> : vector<1xf32>
      %92 = vector.multi_reduction <add>, %91, %cst_60 [1, 2] : vector<1x8x1xf32> to vector<1xf32>
      %93 = vector.shape_cast %92 : vector<1xf32> to vector<1x1x1xf32>
      %94 = vector.extract %93[0, 0, 0] : f32 from vector<1x1x1xf32>
      %95 = arith.subf %89, %81 : vector<8x1xf32>
      %96 = vector.shape_cast %95 : vector<8x1xf32> to vector<1x8x1xf32>
      %cst_61 = arith.constant dense<0.000000e+00> : vector<1xf32>
      %97 = vector.multi_reduction <add>, %96, %cst_61 [1, 2] : vector<1x8x1xf32> to vector<1xf32>
      %98 = vector.shape_cast %97 : vector<1xf32> to vector<1x1x1xf32>
      %99 = vector.extract %98[0, 0, 0] : f32 from vector<1x1x1xf32>
      %100 = arith.addf %94, %99 : f32
      %c0_62 = arith.constant 0 : index
      %c0_63 = arith.constant 0 : index
      %101 = memref.load %arg6[%c0_62, %c0_63] : memref<1x1xf32, #tpu.memory_space<smem>>
      %cst_64 = arith.constant 1.600000e+01 : f32
      %102 = arith.divf %100, %cst_64 : f32
      %103 = arith.addf %101, %102 : f32
      %c0_65 = arith.constant 0 : index
      %c0_66 = arith.constant 0 : index
      %104 = memref.load %arg6[%c0_65, %c0_66] : memref<1x1xf32, #tpu.memory_space<smem>>
      memref.store %103, %arg6[%c0_65, %c0_66] : memref<1x1xf32, #tpu.memory_space<smem>>
    } else {
    }
    return
  }
  func.func @transform_0(%arg0: i32, %arg1: i32) -> (i32, i32) {
    %c0_i32 = arith.constant 0 : i32
    %c0_i32_0 = arith.constant 0 : i32
    return %arg0, %c0_i32 : i32, i32
  }
  func.func @transform_1(%arg0: i32, %arg1: i32) -> (i32, i32) {
    %c0_i32 = arith.constant 0 : i32
    %c0_i32_0 = arith.constant 0 : i32
    return %arg0, %c0_i32 : i32, i32
  }
  func.func @transform_2(%arg0: i32, %arg1: i32) -> (i32, i32) {
    %c0_i32 = arith.constant 0 : i32
    %c0_i32_0 = arith.constant 0 : i32
    return %arg1, %c0_i32 : i32, i32
  }
  func.func @transform_3(%arg0: i32, %arg1: i32) -> (i32, i32) {
    %c0_i32 = arith.constant 0 : i32
    %c0_i32_0 = arith.constant 0 : i32
    return %arg1, %c0_i32 : i32, i32
  }
  func.func @transform_4(%arg0: i32, %arg1: i32) -> (i32, i32) {
    %c0_i32 = arith.constant 0 : i32
    %c0_i32_0 = arith.constant 0 : i32
    %c0_i32_1 = arith.constant 0 : i32
    return %c0_i32, %c0_i32_0 : i32, i32
  }
}

</mosaic_0001>

<llo_original>
// kernel: ntxent_loss.1
$region0: #{ntxent_loss.1}
  #allocation0 [shape = 'u32[]', space=smem, size = 0x4, offset = 0x4, fixed_abs, tag = 'smem constant byte address 0x4 - core index']
  #allocation1 [shape = 'u32[144,128]{1,0:T(1,128)}', space=vmem, size = 0x12000, scoped, tag = 'internal scratch']
  #allocation2 [shape = 'f32[8,1]{1,0:T(8,128)}', space=vmem, size = 0x1000, scoped, tag = 'scratch operand']
  #allocation3 [shape = 'f32[8,1]{1,0:T(8,128)}', space=vmem, size = 0x1000, scoped, tag = 'scratch operand']
  #allocation4 [shape = 'f32[8,1]{1,0:T(8,128)}', space=vmem, size = 0x1000, scoped, tag = 'scratch operand']
  #allocation5 [shape = 'f32[8,1]{1,0:T(8,128)}', space=vmem, size = 0x1000, scoped, tag = 'scratch operand']
  %s0 = inlined_call_operand.vmem [shape: f32[8,128], index: 0, kind: input, shape index: {}, may-alias: {0,2}]
  %s1 = inlined_call_operand.vmem [shape: f32[8,128], index: 1, kind: input, shape index: {}, may-alias: {1,3}]
  %s2 = inlined_call_operand.vmem [shape: f32[8,128], index: 2, kind: input, shape index: {}, may-alias: {0,2}]
  %s3 = inlined_call_operand.vmem [shape: f32[8,128], index: 3, kind: input, shape index: {}, may-alias: {1,3}]
  %s4 = inlined_call_operand.hbm [shape: f32[1,1], index: 4, kind: output, shape index: {}]
  %s5 = sld [smem:[#allocation0]]
  $region38: #{ntxent_loss.1} parent=0
    _
  %s7 = ssub.s32 1, %s5
  %s8 = scalar_select 0, %s7, %s5
  $region1: #{ntxent_loss.1} parent=0
    #allocation6 [shape = 'u8[512]{0}', space=smem, size = 0x200, scoped, tag = 'output window, operand 0, single buffered']
    #allocation7 [shape = 's32[1]{0}', space=sflag, size = 0x4, scoped, tag = 'scoped memory for ntxent_loss.1']
    %9 = vsyncpa [#allocation7], 0
    // Predicated region
    $region2: #{ntxent_loss.1} parent=1 // pred_check
      _
    $region3: #{ntxent_loss.1} parent=1 // pred_check_branch
      %11 = sbr.rel (0) target = $region5
    $region4: #{ntxent_loss.1} parent=1 // pred_region
      _
    $region5: #{ntxent_loss.1} parent=1 // pred_fallthru
      _
    // Predicated region
    $region6: #{ntxent_loss.1} parent=1 // pred_check
      _
    $region7: #{ntxent_loss.1} parent=1 // pred_check_branch
      %13 = sbr.rel (0) target = $region9
    $region8: #{ntxent_loss.1} parent=1 // pred_region
      _
    $region9: #{ntxent_loss.1} parent=1 // pred_fallthru
      _
    // Predicated region
    $region10: #{ntxent_loss.1} parent=1 // pred_check
      _
    $region11: #{ntxent_loss.1} parent=1 // pred_check_branch
      %15 = sbr.rel (0) target = $region13
    $region12: #{ntxent_loss.1} parent=1 // pred_region
      _
    $region13: #{ntxent_loss.1} parent=1 // pred_fallthru
      _
    // Predicated region
    $region14: #{ntxent_loss.1} parent=1 // pred_check
      _
    $region15: #{ntxent_loss.1} parent=1 // pred_check_branch
      %17 = sbr.rel (0) target = $region17
    $region16: #{ntxent_loss.1} parent=1 // pred_region
      _
    $region17: #{ntxent_loss.1} parent=1 // pred_fallthru
      _
    %p18 = scmp.eq.s32.totalorder 0, 0
    %p19 = scmp.eq.s32.totalorder 0, 0
    %p20 = pnand %p18, %p19
    %p21 = pneg %p20
    // Predicated region
    $region18: #{ntxent_loss.1} parent=1 // pred_check
      _
    $region19: #{ntxent_loss.1} parent=1 // pred_check_branch
      %23 = sbr.rel (%p20) target = $region21
    $region20: #{ntxent_loss.1} parent=1 // pred_region
      %s24 = scalar_lea.smem [#allocation6], 0
      %25 = sst [smem:[%s24]] 0.0
    $region21: #{ntxent_loss.1} parent=1 // pred_fallthru
      _
    // Predicated region
    $region22: #{ntxent_loss.1} parent=1 // pred_check
      %p26 = pneg %p19
    $region23: #{ntxent_loss.1} parent=1 // pred_check_branch
      %28 = sbr.rel (%p26) target = $region25
    $region24: #{ntxent_loss.1} parent=1 // pred_region
      %vm29 = vcmask 7168
      %30 = vst.msk [vmem:[#allocation2] sm:$0xff] %vm29, -inf
      %31 = vst.msk [vmem:[#allocation3] sm:$0xff] %vm29, 0.0
      %32 = vst.msk [vmem:[#allocation4] sm:$0xff] %vm29, -inf
      %33 = vst.msk [vmem:[#allocation5] sm:$0xff] %vm29, 0.0
    $region25: #{ntxent_loss.1} parent=1 // pred_fallthru
      _
    %v34 = vld [vmem:[%s0] sm:$0xff]
    %v35 = vmul.f32 %v34, 2.0
    %v36 = vld [vmem:[%s1] sm:$0xff]
    %v37 = vmul.f32 %v36, 2.0
    %v38 = vld [vmem:[%s2] sm:$0xff]
    %v39 = vld [vmem:[%s3] sm:$0xff]
    %40 = vmatprep.subr.mxu0 0.0
    %41 = vmatpush1.xpose.msra.mxu0 %v38
    %42 = vmatprep.subr.mxu0 0.0
    %43 = vmatpush1.xpose.msra.mxu0 0.0
    %44 = vmatprep.subr.mxu0 0.0
    %45 = vmatpush1.xpose.msra.mxu0 0.0
    %46 = vmatprep.subr.mxu0 0.0
    %47 = vmatpush1.xpose.msra.mxu0 0.0
    %48 = vmatprep.subr.mxu0 0.0
    %49 = vmatpush1.xpose.msra.mxu0 0.0
    %50 = vmatprep.subr.mxu0 0.0
    %51 = vmatpush1.xpose.msra.mxu0 0.0
    %52 = vmatprep.subr.mxu0 0.0
    %53 = vmatpush1.xpose.msra.mxu0 0.0
    %54 = vmatprep.subr.mxu0 0.0
    %55 = vmatpush1.xpose.msra.mxu0 0.0
    %56 = vmatprep.subr.mxu0 0.0
    %57 = vmatpush1.xpose.msra.mxu0 0.0
    %58 = vmatprep.subr.mxu0 0.0
    %59 = vmatpush1.xpose.msra.mxu0 0.0
    %60 = vmatprep.subr.mxu0 0.0
    %61 = vmatpush1.xpose.msra.mxu0 0.0
    %62 = vmatprep.subr.mxu0 0.0
    %63 = vmatpush1.xpose.msra.mxu0 0.0
    %64 = vmatprep.subr.mxu0 0.0
    %65 = vmatpush1.xpose.msra.mxu0 0.0
    %66 = vmatprep.subr.mxu0 0.0
    %67 = vmatpush1.xpose.msra.mxu0 0.0
    %68 = vmatprep.subr.mxu0 0.0
    %69 = vmatpush1.xpose.msra.mxu0 0.0
    %70 = vmatprep.subr.mxu0 0.0
    %71 = vmatpush1.xpose.msra.mxu0 0.0
    %72 = vmatprep.subr.mxu0 0.0
    %73 = vmatpush1.xpose.msra.mxu0 0.0
    %74 = vmatprep.subr.mxu0 0.0
    %75 = vmatpush1.xpose.msra.mxu0 0.0
    %76 = vmatprep.subr.mxu0 0.0
    %77 = vmatpush1.xpose.msra.mxu0 0.0
    %78 = vmatprep.subr.mxu0 0.0
    %79 = vmatpush1.xpose.msra.mxu0 0.0
    %80 = vmatprep.subr.mxu0 0.0
    %81 = vmatpush1.xpose.msra.mxu0 0.0
    %82 = vmatprep.subr.mxu0 0.0
    %83 = vmatpush1.xpose.msra.mxu0 0.0
    %84 = vmatprep.subr.mxu0 0.0
    %85 = vmatpush1.xpose.msra.mxu0 0.0
    %86 = vmatprep.subr.mxu0 0.0
    %87 = vmatpush1.xpose.msra.mxu0 0.0
    %88 = vmatprep.subr.mxu0 0.0
    %89 = vmatpush1.xpose.msra.mxu0 0.0
    %90 = vmatprep.subr.mxu0 0.0
    %91 = vmatpush1.xpose.msra.mxu0 0.0
    %92 = vmatprep.subr.mxu0 0.0
    %93 = vmatpush1.xpose.msra.mxu0 0.0
    %94 = vmatprep.subr.mxu0 0.0
    %95 = vmatpush1.xpose.msra.mxu0 0.0
    %96 = vmatprep.subr.mxu0 0.0
    %97 = vmatpush1.xpose.msra.mxu0 0.0
    %98 = vmatprep.subr.mxu0 0.0
    %99 = vmatpush1.xpose.msra.mxu0 0.0
    %100 = vmatprep.subr.mxu0 0.0
    %101 = vmatpush1.xpose.msra.mxu0 0.0
    %102 = vmatprep.subr.mxu0 0.0
    %103 = vmatpush1.xpose.msra.mxu0 0.0
    %104 = vmatprep.mubr.f32.mxu0 0.0
    %105 = vmatmul.mubr.f32.gmra.mrb[0].mxu0 %v35
    %v106 = vpop.f32.mrb[0].mxu0
    %v107 = vadd.f32 0.0, %v106
    %v108 = vpop.f32.mrb[0].mxu0
    %109 = vdwg.mxu0
    %110 = vmatprep.subr.mxu0 0.0
    %111 = vmatpush1.xpose.msra.mxu0 %v39
    %112 = vmatprep.subr.mxu0 0.0
    %113 = vmatpush1.xpose.msra.mxu0 0.0
    %114 = vmatprep.subr.mxu0 0.0
    %115 = vmatpush1.xpose.msra.mxu0 0.0
    %116 = vmatprep.subr.mxu0 0.0
    %117 = vmatpush1.xpose.msra.mxu0 0.0
    %118 = vmatprep.subr.mxu0 0.0
    %119 = vmatpush1.xpose.msra.mxu0 0.0
    %120 = vmatprep.subr.mxu0 0.0
    %121 = vmatpush1.xpose.msra.mxu0 0.0
    %122 = vmatprep.subr.mxu0 0.0
    %123 = vmatpush1.xpose.msra.mxu0 0.0
    %124 = vmatprep.subr.mxu0 0.0
    %125 = vmatpush1.xpose.msra.mxu0 0.0
    %126 = vmatprep.subr.mxu0 0.0
    %127 = vmatpush1.xpose.msra.mxu0 0.0
    %128 = vmatprep.subr.mxu0 0.0
    %129 = vmatpush1.xpose.msra.mxu0 0.0
    %130 = vmatprep.subr.mxu0 0.0
    %131 = vmatpush1.xpose.msra.mxu0 0.0
    %132 = vmatprep.subr.mxu0 0.0
    %133 = vmatpush1.xpose.msra.mxu0 0.0
    %134 = vmatprep.subr.mxu0 0.0
    %135 = vmatpush1.xpose.msra.mxu0 0.0
    %136 = vmatprep.subr.mxu0 0.0
    %137 = vmatpush1.xpose.msra.mxu0 0.0
    %138 = vmatprep.subr.mxu0 0.0
    %139 = vmatpush1.xpose.msra.mxu0 0.0
    %140 = vmatprep.subr.mxu0 0.0
    %141 = vmatpush1.xpose.msra.mxu0 0.0
    %142 = vmatprep.subr.mxu0 0.0
    %143 = vmatpush1.xpose.msra.mxu0 0.0
    %144 = vmatprep.subr.mxu0 0.0
    %145 = vmatpush1.xpose.msra.mxu0 0.0
    %146 = vmatprep.subr.mxu0 0.0
    %147 = vmatpush1.xpose.msra.mxu0 0.0
    %148 = vmatprep.subr.mxu0 0.0
    %149 = vmatpush1.xpose.msra.mxu0 0.0
    %150 = vmatprep.subr.mxu0 0.0
    %151 = vmatpush1.xpose.msra.mxu0 0.0
    %152 = vmatprep.subr.mxu0 0.0
    %153 = vmatpush1.xpose.msra.mxu0 0.0
    %154 = vmatprep.subr.mxu0 0.0
    %155 = vmatpush1.xpose.msra.mxu0 0.0
    %156 = vmatprep.subr.mxu0 0.0
    %157 = vmatpush1.xpose.msra.mxu0 0.0
    %158 = vmatprep.subr.mxu0 0.0
    %159 = vmatpush1.xpose.msra.mxu0 0.0
    %160 = vmatprep.subr.mxu0 0.0
    %161 = vmatpush1.xpose.msra.mxu0 0.0
    %162 = vmatprep.subr.mxu0 0.0
    %163 = vmatpush1.xpose.msra.mxu0 0.0
    %164 = vmatprep.subr.mxu0 0.0
    %165 = vmatpush1.xpose.msra.mxu0 0.0
    %166 = vmatprep.subr.mxu0 0.0
    %167 = vmatpush1.xpose.msra.mxu0 0.0
    %168 = vmatprep.subr.mxu0 0.0
    %169 = vmatpush1.xpose.msra.mxu0 0.0
    %170 = vmatprep.subr.mxu0 0.0
    %171 = vmatpush1.xpose.msra.mxu0 0.0
    %172 = vmatprep.subr.mxu0 0.0
    %173 = vmatpush1.xpose.msra.mxu0 0.0
    %174 = vmatprep.mubr.f32.mxu0 0.0
    %175 = vmatmul.mubr.f32.gmra.mrb[0].mxu0 %v35
    %v176 = vpop.f32.mrb[0].mxu0
    %v177 = vadd.f32 0.0, %v176
    %v178 = vpop.f32.mrb[0].mxu0
    %179 = vdwg.mxu0
    %180 = vmatprep.subr.mxu0 0.0
    %181 = vmatpush1.xpose.msra.mxu0 %v38
    %182 = vmatprep.subr.mxu0 0.0
    %183 = vmatpush1.xpose.msra.mxu0 0.0
    %184 = vmatprep.subr.mxu0 0.0
    %185 = vmatpush1.xpose.msra.mxu0 0.0
    %186 = vmatprep.subr.mxu0 0.0
    %187 = vmatpush1.xpose.msra.mxu0 0.0
    %188 = vmatprep.subr.mxu0 0.0
    %189 = vmatpush1.xpose.msra.mxu0 0.0
    %190 = vmatprep.subr.mxu0 0.0
    %191 = vmatpush1.xpose.msra.mxu0 0.0
    %192 = vmatprep.subr.mxu0 0.0
    %193 = vmatpush1.xpose.msra.mxu0 0.0
    %194 = vmatprep.subr.mxu0 0.0
    %195 = vmatpush1.xpose.msra.mxu0 0.0
    %196 = vmatprep.subr.mxu0 0.0
    %197 = vmatpush1.xpose.msra.mxu0 0.0
    %198 = vmatprep.subr.mxu0 0.0
    %199 = vmatpush1.xpose.msra.mxu0 0.0
    %200 = vmatprep.subr.mxu0 0.0
    %201 = vmatpush1.xpose.msra.mxu0 0.0
    %202 = vmatprep.subr.mxu0 0.0
    %203 = vmatpush1.xpose.msra.mxu0 0.0
    %204 = vmatprep.subr.mxu0 0.0
    %205 = vmatpush1.xpose.msra.mxu0 0.0
    %206 = vmatprep.subr.mxu0 0.0
    %207 = vmatpush1.xpose.msra.mxu0 0.0
    %208 = vmatprep.subr.mxu0 0.0
    %209 = vmatpush1.xpose.msra.mxu0 0.0
    %210 = vmatprep.subr.mxu0 0.0
    %211 = vmatpush1.xpose.msra.mxu0 0.0
    %212 = vmatprep.subr.mxu0 0.0
    %213 = vmatpush1.xpose.msra.mxu0 0.0
    %214 = vmatprep.subr.mxu0 0.0
    %215 = vmatpush1.xpose.msra.mxu0 0.0
    %216 = vmatprep.subr.mxu0 0.0
    %217 = vmatpush1.xpose.msra.mxu0 0.0
    %218 = vmatprep.subr.mxu0 0.0
    %219 = vmatpush1.xpose.msra.mxu0 0.0
    %220 = vmatprep.subr.mxu0 0.0
    %221 = vmatpush1.xpose.msra.mxu0 0.0
    %222 = vmatprep.subr.mxu0 0.0
    %223 = vmatpush1.xpose.msra.mxu0 0.0
    %224 = vmatprep.subr.mxu0 0.0
    %225 = vmatpush1.xpose.msra.mxu0 0.0
    %226 = vmatprep.subr.mxu0 0.0
    %227 = vmatpush1.xpose.msra.mxu0 0.0
    %228 = vmatprep.subr.mxu0 0.0
    %229 = vmatpush1.xpose.msra.mxu0 0.0
    %230 = vmatprep.subr.mxu0 0.0
    %231 = vmatpush1.xpose.msra.mxu0 0.0
    %232 = vmatprep.subr.mxu0 0.0
    %233 = vmatpush1.xpose.msra.mxu0 0.0
    %234 = vmatprep.subr.mxu0 0.0
    %235 = vmatpush1.xpose.msra.mxu0 0.0
    %236 = vmatprep.subr.mxu0 0.0
    %237 = vmatpush1.xpose.msra.mxu0 0.0
    %238 = vmatprep.subr.mxu0 0.0
    %239 = vmatpush1.xpose.msra.mxu0 0.0
    %240 = vmatprep.subr.mxu0 0.0
    %241 = vmatpush1.xpose.msra.mxu0 0.0
    %242 = vmatprep.subr.mxu0 0.0
    %243 = vmatpush1.xpose.msra.mxu0 0.0
    %244 = vmatprep.mubr.f32.mxu0 0.0
    %245 = vmatmul.mubr.f32.gmra.mrb[0].mxu0 %v37
    %v246 = vpop.f32.mrb[0].mxu0
    %v247 = vadd.f32 0.0, %v246
    %v248 = vpop.f32.mrb[0].mxu0
    %249 = vdwg.mxu0
    %250 = vmatprep.subr.mxu0 0.0
    %251 = vmatpush1.xpose.msra.mxu0 %v39
    %252 = vmatprep.subr.mxu0 0.0
    %253 = vmatpush1.xpose.msra.mxu0 0.0
    %254 = vmatprep.subr.mxu0 0.0
    %255 = vmatpush1.xpose.msra.mxu0 0.0
    %256 = vmatprep.subr.mxu0 0.0
    %257 = vmatpush1.xpose.msra.mxu0 0.0
    %258 = vmatprep.subr.mxu0 0.0
    %259 = vmatpush1.xpose.msra.mxu0 0.0
    %260 = vmatprep.subr.mxu0 0.0
    %261 = vmatpush1.xpose.msra.mxu0 0.0
    %262 = vmatprep.subr.mxu0 0.0
    %263 = vmatpush1.xpose.msra.mxu0 0.0
    %264 = vmatprep.subr.mxu0 0.0
    %265 = vmatpush1.xpose.msra.mxu0 0.0
    %266 = vmatprep.subr.mxu0 0.0
    %267 = vmatpush1.xpose.msra.mxu0 0.0
    %268 = vmatprep.subr.mxu0 0.0
    %269 = vmatpush1.xpose.msra.mxu0 0.0
    %270 = vmatprep.subr.mxu0 0.0
    %271 = vmatpush1.xpose.msra.mxu0 0.0
    %272 = vmatprep.subr.mxu0 0.0
    %273 = vmatpush1.xpose.msra.mxu0 0.0
    %274 = vmatprep.subr.mxu0 0.0
    %275 = vmatpush1.xpose.msra.mxu0 0.0
    %276 = vmatprep.subr.mxu0 0.0
    %277 = vmatpush1.xpose.msra.mxu0 0.0
    %278 = vmatprep.subr.mxu0 0.0
    %279 = vmatpush1.xpose.msra.mxu0 0.0
    %280 = vmatprep.subr.mxu0 0.0
    %281 = vmatpush1.xpose.msra.mxu0 0.0
    %282 = vmatprep.subr.mxu0 0.0
    %283 = vmatpush1.xpose.msra.mxu0 0.0
    %284 = vmatprep.subr.mxu0 0.0
    %285 = vmatpush1.xpose.msra.mxu0 0.0
    %286 = vmatprep.subr.mxu0 0.0
    %287 = vmatpush1.xpose.msra.mxu0 0.0
    %288 = vmatprep.subr.mxu0 0.0
    %289 = vmatpush1.xpose.msra.mxu0 0.0
    %290 = vmatprep.subr.mxu0 0.0
    %291 = vmatpush1.xpose.msra.mxu0 0.0
    %292 = vmatprep.subr.mxu0 0.0
    %293 = vmatpush1.xpose.msra.mxu0 0.0
    %294 = vmatprep.subr.mxu0 0.0
    %295 = vmatpush1.xpose.msra.mxu0 0.0
    %296 = vmatprep.subr.mxu0 0.0
    %297 = vmatpush1.xpose.msra.mxu0 0.0
    %298 = vmatprep.subr.mxu0 0.0
    %299 = vmatpush1.xpose.msra.mxu0 0.0
    %300 = vmatprep.subr.mxu0 0.0
    %301 = vmatpush1.xpose.msra.mxu0 0.0
    %302 = vmatprep.subr.mxu0 0.0
    %303 = vmatpush1.xpose.msra.mxu0 0.0
    %304 = vmatprep.subr.mxu0 0.0
    %305 = vmatpush1.xpose.msra.mxu0 0.0
    %306 = vmatprep.subr.mxu0 0.0
    %307 = vmatpush1.xpose.msra.mxu0 0.0
    %308 = vmatprep.subr.mxu0 0.0
    %309 = vmatpush1.xpose.msra.mxu0 0.0
    %310 = vmatprep.subr.mxu0 0.0
    %311 = vmatpush1.xpose.msra.mxu0 0.0
    %312 = vmatprep.subr.mxu0 0.0
    %313 = vmatpush1.xpose.msra.mxu0 0.0
    %314 = vmatprep.mubr.f32.mxu0 0.0
    %315 = vmatmul.mubr.f32.gmra.mrb[0].mxu0 %v37
    %v316 = vpop.f32.mrb[0].mxu0
    %v317 = vadd.f32 0.0, %v316
    %v318 = vpop.f32.mrb[0].mxu0
    %319 = vdwg.mxu0
    %vm320 = vcmask 64512
    %v321 = vsel %vm320, %v107, -inf
    %322 = vmax.xlane.f32.xlu0 %v321
    %v323 = vpop.xlane.xlu0 %322
    %v324 = vsel %vm320, %v177, -inf
    %325 = vmax.xlane.f32.xlu0 %v324
    %v326 = vpop.xlane.xlu0 %325
    %v327 = vmax.f32 %v323, %v326
    %v328 = vld [vmem:[#allocation2] sm:$0xff]
    %v329 = vmax.f32 %v328, %v327
    %v330 = vsub.f32 %v328, %v329
    %v331 = vmul.f32 %v330, 1.442695
    %v332 = vpow.pop %v331
    %v333 = vld [vmem:[#allocation3] sm:$0xff]
    %v334 = vmul.f32 %v332, %v333
    %336 = vset.pattern.permute.xlu0 0
    %337 = vperm.xlu0 %336, %v329
    %v338 = vpop.permute.xlu0 %337
    %v340 = vsub.f32 %v107, %v338
    %v341 = vmul.f32 %v340, 1.442695
    %v342 = vpow.pop %v341
    %v343 = vsel %vm320, %v342, 0.0
    %344 = vadd.xlane.f32.xlu0 %v343
    %v345 = vpop.xlane.xlu0 %344
    %v346 = vadd.f32 %v334, %v345
    %v347 = vsub.f32 %v177, %v338
    %v348 = vmul.f32 %v347, 1.442695
    %v349 = vpow.pop %v348
    %v350 = vsel %vm320, %v349, 0.0
    %351 = vadd.xlane.f32.xlu0 %v350
    %v352 = vpop.xlane.xlu0 %351
    %v353 = vadd.f32 %v346, %v352
    %vm354 = vcmask 7168
    %355 = vst.msk [vmem:[#allocation3] sm:$0xff] %vm354, %v353
    %356 = vst.msk [vmem:[#allocation2] sm:$0xff] %vm354, %v329
    %v357 = vsel %vm320, %v247, -inf
    %358 = vmax.xlane.f32.xlu0 %v357
    %v359 = vpop.xlane.xlu0 %358
    %v360 = vsel %vm320, %v317, -inf
    %361 = vmax.xlane.f32.xlu0 %v360
    %v362 = vpop.xlane.xlu0 %361
    %v363 = vmax.f32 %v359, %v362
    %v364 = vld [vmem:[#allocation4] sm:$0xff]
    %v365 = vmax.f32 %v364, %v363
    %v366 = vsub.f32 %v364, %v365
    %v367 = vmul.f32 %v366, 1.442695
    %v368 = vpow.pop %v367
    %v369 = vld [vmem:[#allocation5] sm:$0xff]
    %v370 = vmul.f32 %v368, %v369
    %372 = vset.pattern.permute.xlu0 0
    %373 = vperm.xlu0 %372, %v365
    %v374 = vpop.permute.xlu0 %373
    %v376 = vsub.f32 %v247, %v374
    %v377 = vmul.f32 %v376, 1.442695
    %v378 = vpow.pop %v377
    %v379 = vsel %vm320, %v378, 0.0
    %380 = vadd.xlane.f32.xlu0 %v379
    %v381 = vpop.xlane.xlu0 %380
    %v382 = vadd.f32 %v370, %v381
    %v383 = vsub.f32 %v317, %v374
    %v384 = vmul.f32 %v383, 1.442695
    %v385 = vpow.pop %v384
    %v386 = vsel %vm320, %v385, 0.0
    %387 = vadd.xlane.f32.xlu0 %v386
    %v388 = vpop.xlane.xlu0 %387
    %v389 = vadd.f32 %v382, %v388
    %390 = vst.msk [vmem:[#allocation5] sm:$0xff] %vm354, %v389
    %391 = vst.msk [vmem:[#allocation4] sm:$0xff] %vm354, %v365
    // Predicated region
    $region26: #{ntxent_loss.1} parent=1 // pred_check
      %p392 = pneg %p19
    $region27: #{ntxent_loss.1} parent=1 // pred_check_branch
      %394 = sbr.rel (%p392) target = $region29
    $region28: #{ntxent_loss.1} parent=1 // pred_region
      %v395 = vld [vmem:[%s0] sm:$0xff]
      %v396 = vld [vmem:[%s1] sm:$0xff]
      %v397 = vmul.f32 %v395, %v396
      %398 = vadd.xlane.f32.xlu0 %v397
      %v399 = vpop.xlane.xlu0 %398
      %v400 = vmul.f32 %v399, 2.0
      %v401 = vld [vmem:[#allocation2] sm:$0xff]
      %v402 = vld [vmem:[#allocation3] sm:$0xff]
      %v403 = vlog2.pop %v402
      %v404 = vmul.f32 %v403, 0.6931472
      %v405 = vadd.f32 %v401, %v404
      %v406 = vld [vmem:[#allocation4] sm:$0xff]
      %v407 = vld [vmem:[#allocation5] sm:$0xff]
      %v408 = vlog2.pop %v407
      %v409 = vmul.f32 %v408, 0.6931472
      %v410 = vadd.f32 %v406, %v409
      %v411 = vsub.f32 %v405, %v400
      %v412 = vsel %vm354, %v411, 0.0
      %413 = vadd.xlane.f32.xlu0 %v412
      %v414 = vpop.xlane.xlu0 %413
      %v415 = vrot.slane %v414, 4
      %v416 = vadd.f32 %v414, %v415
      %v417 = vrot.slane %v416, 2
      %v418 = vadd.f32 %v416, %v417
      %v419 = vrot.slane %v418, 1
      %v420 = vadd.f32 %v418, %v419
      %s421 = vtos %v420
      %v422 = vsub.f32 %v410, %v400
      %v423 = vsel %vm354, %v422, 0.0
      %424 = vadd.xlane.f32.xlu0 %v423
      %v425 = vpop.xlane.xlu0 %424
      %v426 = vrot.slane %v425, 4
      %v427 = vadd.f32 %v425, %v426
      %v428 = vrot.slane %v427, 2
      %v429 = vadd.f32 %v427, %v428
      %v430 = vrot.slane %v429, 1
      %v431 = vadd.f32 %v429, %v430
      %s432 = vtos %v431
      %s433 = sadd.f32 %s421, %s432
      %s434 = sld [smem:[#allocation6]]
      %v435 = vrcp.pop 16.0
      %s436 = vtos %v435
      %s437 = smul.f32 %s433, %s436
      %s438 = sadd.f32 %s434, %s437
      %s439 = scalar_lea.smem [#allocation6], 0
      %440 = sst [smem:[%s439]] %s438
    $region29: #{ntxent_loss.1} parent=1 // pred_fallthru
      _
    // Predicated region
    $region30: #{ntxent_loss.1} parent=1 // pred_check
      _
    $region31: #{ntxent_loss.1} parent=1 // pred_check_branch
      %442 = sbr.rel (0) target = $region33
    $region32: #{ntxent_loss.1} parent=1 // pred_region
      %s444 = ssub.s32 16, 16
      %445 = vsyncadd [#allocation7], %s444
      %448 = dma.smem_to_hbm [#allocation6], 16, %s4, [#allocation7]
    $region33: #{ntxent_loss.1} parent=1 // pred_fallthru
      _
    // Predicated region
    $region34: #{ntxent_loss.1} parent=1 // pred_check
      _
    $region35: #{ntxent_loss.1} parent=1 // pred_check_branch
      %450 = sbr.rel (0) target = $region37
    $region36: #{ntxent_loss.1} parent=1 // pred_region
      %451 = dma.done [#allocation7], 16
    $region37: #{ntxent_loss.1} parent=1 // pred_fallthru
      _
    %452 = sfence
    %453 = vsyncpa [#allocation7], 1

</llo_original>
